<compile_context>
chip_gen: v7x
topology: tpu7x:2x2x1
jax: 0.10.0
libtpu: 0.0.40
codegen_flags: <defaults>
</compile_context>

<pallas_src>
import math
import functools

import jax
import jax.numpy as jnp
from jax import lax
from jax.experimental import pallas as pl
from jax.experimental.pallas import tpu as pltpu

_VMEM_LIMIT = 48 * 1024 * 1024  # > 32 MiB scoped default, < v7x's 64 MiB/TC physical


def _qkv_proj_kernel(x_ref, w_ref, b_ref, q_ref, kv_ref):
    """relu(x @ W_qkv + b), split into q (first C cols) and kv (last 2C cols)."""
    C = q_ref.shape[-1]
    x = x_ref[0]                                                   # (Tr, C), compute dtype
    qkv = jnp.dot(x, w_ref[...], preferred_element_type=jnp.float32)
    qkv = jnp.maximum(qkv + b_ref[...], 0.0)                       # bias + ReLU in f32
    q_ref[0] = qkv[:, :C].astype(q_ref.dtype)
    kv_ref[0] = qkv[:, C:].astype(kv_ref.dtype)


def _attn_kernel(q_ref, kv_ref, wproj_ref, bproj_ref, o_ref, *,
                 n_head, tq, tkv, compute_dtype):
    C = o_ref.shape[-1]
    D = C // n_head
    scale = 1.0 / math.sqrt(D)

    qi = pl.program_id(1)
    q_start = qi * tq

    # Causal block skipping: KV blocks entirely above the diagonal never run.
    num_unmasked = q_start // tkv                  # blocks fully below the diagonal
    num_total = (q_start + tq - 1) // tkv + 1      # blocks intersecting the causal region

    # Hoisted iotas, shared by every head / diagonal block.
    row_ids = q_start + lax.broadcasted_iota(jnp.int32, (tq, tkv), 0)
    col_ids = lax.broadcasted_iota(jnp.int32, (tq, tkv), 1)

    q_tile = q_ref[0]                              # (tq, C), already ReLU'd, compute dtype

    head_outs = []
    for h in range(n_head):                        # static, unrolled over heads
        lo = h * D
        q_h = q_tile[:, lo:lo + D]                 # (tq, D) lane slice, no transpose

        def scores(j, lo=lo, q_h=q_h):
            start = pl.multiple_of(j * tkv, tkv)
            k_j = kv_ref[0, pl.ds(start, tkv), pl.ds(lo, D)]            # (tkv, D)
            s = lax.dot_general(q_h, k_j, (((1,), (1,)), ((), ())),     # q_h @ k_j.T
                                preferred_element_type=jnp.float32)
            return s * scale

        def pv(j, s, lo=lo):
            start = pl.multiple_of(j * tkv, tkv)
            v_j = kv_ref[0, pl.ds(start, tkv), pl.ds(C + lo, D)]        # (tkv, D)
            return jnp.dot(s.astype(compute_dtype), v_j,
                           preferred_element_type=jnp.float32)

        def body_unmasked(j, y):
            # q, k >= 0 after the qkv ReLU => scores >= 0, so F.relu(att) is the
            # identity below the diagonal; no mask / relu work needed here.
            return y + pv(j, scores(j))

        def body_masked(j, y):
            s = scores(j)
            # masked_fill(-inf) followed by relu() collapses to a zero fill
            # (scores are non-negative, see above) -- no -inf constants generated.
            s = jnp.where(col_ids + j * tkv <= row_ids, s, 0.0)
            return y + pv(j, s)

        y_h = jnp.zeros((tq, D), jnp.float32)
        y_h = lax.fori_loop(0, num_unmasked, body_unmasked, y_h)
        y_h = lax.fori_loop(num_unmasked, num_total, body_masked, y_h)
        head_outs.append(y_h)

    # Heads are lane-contiguous in column order, so concatenation reproduces the
    # y.transpose(1, 2).reshape(T, C) layout without an XLU transpose.
    y_all = jnp.concatenate(head_outs, axis=-1).astype(compute_dtype)   # (tq, C)

    out = jnp.dot(y_all, wproj_ref[...], preferred_element_type=jnp.float32)
    out = out + bproj_ref[...]                     # f32 bias
    o_ref[0] = out.astype(o_ref.dtype)


def causal_self_attention(x, w_qkv, b_qkv, w_proj, b_proj, n_head, *,
                          compute_dtype=jnp.bfloat16,
                          q_tile=128, kv_tile=128, row_tile=256):
    """Forward pass of the ReLU CausalSelfAttention module (eval mode).

    x: (B, T, C); w_qkv: (C, 3C) (= c_attn.weight.T); b_qkv: (1, 3C);
    w_proj: (C, C) (= c_proj.weight.T); b_proj: (1, C).
    """
    B, T, C = x.shape
    assert C % n_head == 0, "n_embd must be divisible by n_head"

    # Tile sizes must divide T; fall back to the full sequence for small T.
    tq = q_tile if T % q_tile == 0 else T
    tkv = kv_tile if T % kv_tile == 0 else T
    tr = row_tile if T % row_tile == 0 else T

    # bf16 (or chosen dtype) at the MXU inputs; biases & accumulation stay f32.
    xc = x.astype(compute_dtype)
    wq = w_qkv.astype(compute_dtype)
    wp = w_proj.astype(compute_dtype)
    bq = b_qkv.astype(jnp.float32)
    bp = b_proj.astype(jnp.float32)

    # ---- stage 1: fused qkv projection + ReLU -------------------------------------
    q, kv = pl.pallas_call(
        _qkv_proj_kernel,
        out_shape=(jax.ShapeDtypeStruct((B, T, C), compute_dtype),
                   jax.ShapeDtypeStruct((B, T, 2 * C), compute_dtype)),
        grid=(B, T // tr),
        in_specs=[
            pl.BlockSpec((1, tr, C), lambda b, r: (b, r, 0)),       # x row tile
            pl.BlockSpec((C, 3 * C), lambda b, r: (0, 0)),          # W_qkv (resident)
            pl.BlockSpec((1, 3 * C), lambda b, r: (0, 0)),          # b_qkv
        ],
        out_specs=(pl.BlockSpec((1, tr, C), lambda b, r: (b, r, 0)),
                   pl.BlockSpec((1, tr, 2 * C), lambda b, r: (b, r, 0))),
        compiler_params=pltpu.CompilerParams(
            dimension_semantics=("parallel", "parallel"),
            vmem_limit_bytes=_VMEM_LIMIT),
    )(xc, wq, bq)

    # ---- stage 2: causal ReLU-attention + fused output projection ------------------
    kernel = functools.partial(_attn_kernel, n_head=n_head, tq=tq, tkv=tkv,
                               compute_dtype=compute_dtype)
    out = pl.pallas_call(
        kernel,
        out_shape=jax.ShapeDtypeStruct((B, T, C), x.dtype),
        grid=(B, T // tq),
        in_specs=[
            pl.BlockSpec((1, tq, C), lambda b, i: (b, i, 0)),       # q tile
            pl.BlockSpec((1, T, 2 * C), lambda b, i: (b, 0, 0)),    # K/V, full seq / batch
            pl.BlockSpec((C, C), lambda b, i: (0, 0)),              # W_proj (resident)
            pl.BlockSpec((1, C), lambda b, i: (0, 0)),              # b_proj
        ],
        out_specs=pl.BlockSpec((1, tq, C), lambda b, i: (b, i, 0)),
        compiler_params=pltpu.CompilerParams(
            dimension_semantics=("parallel", "parallel"),
            vmem_limit_bytes=_VMEM_LIMIT),
    )(q, kv, wp, bp)
    return out


def _reference(x, w_qkv, b_qkv, w_proj, b_proj, n_head):
    """Pure-JAX reference matching the PyTorch forward (eval mode)."""
    B, T, C = x.shape
    D = C // n_head
    qkv = jnp.maximum(x @ w_qkv + b_qkv[0], 0.0)
    q, k, v = jnp.split(qkv, 3, axis=-1)
    q = q.reshape(B, T, n_head, D).transpose(0, 2, 1, 3)
    k = k.reshape(B, T, n_head, D).transpose(0, 2, 1, 3)
    v = v.reshape(B, T, n_head, D).transpose(0, 2, 1, 3)
    att = (q @ jnp.swapaxes(k, -2, -1)) / math.sqrt(D)
    mask = jnp.tril(jnp.ones((T, T), dtype=bool))[None, None]
    att = jnp.where(mask, att, -jnp.inf)
    att = jnp.maximum(att, 0.0)
    y = att @ v
    y = y.transpose(0, 2, 1, 3).reshape(B, T, C)
    return y @ w_proj + b_proj[0]


if __name__ == "__main__":
    B, T, C, H = 2, 8, 32, 4   # batch, seq (== block_size), n_embd, n_head

    key = jax.random.PRNGKey(0)
    kx, k1, k2, k3, k4 = jax.random.split(key, 5)
    x = jax.random.normal(kx, (B, T, C), dtype=jnp.float32)
    # PyTorch Linear weights stored transposed as (in, out)
    w_qkv = 0.02 * jax.random.normal(k1, (C, 3 * C), dtype=jnp.float32)
    b_qkv = 0.02 * jax.random.normal(k2, (1, 3 * C), dtype=jnp.float32)
    w_proj = 0.02 * jax.random.normal(k3, (C, C), dtype=jnp.float32)
    b_proj = 0.02 * jax.random.normal(k4, (1, C), dtype=jnp.float32)

    ref = _reference(x, w_qkv, b_qkv, w_proj, b_proj, H)

    # exact-path check (f32 MXU inputs)
    out_f32 = causal_self_attention(x, w_qkv, b_qkv, w_proj, b_proj, H,
                                    compute_dtype=jnp.float32)
    out_f32 = jax.block_until_ready(out_f32)
    assert jnp.allclose(out_f32, ref, atol=2e-5, rtol=1e-4), "f32 mismatch vs reference"

    # production path: bf16 MXU inputs, f32 accumulation
    out_bf16 = causal_self_attention(x, w_qkv, b_qkv, w_proj, b_proj, H,
                                     compute_dtype=jnp.bfloat16)
    out_bf16 = jax.block_until_ready(out_bf16)
    assert jnp.allclose(out_bf16, ref, atol=1e-2, rtol=1e-1), "bf16 mismatch vs reference"

    print("KERNEL_OK")
</pallas_src>

<mosaic_0001>
module attributes {stable_mosaic.version = 11 : i64} {
  func.func @_qkv_proj_kernel(%arg0: i32, %arg1: i32, %arg2: memref<1x8x32xf32, #tpu.memory_space<vmem>>, %arg3: memref<32x96xf32, #tpu.memory_space<vmem>>, %arg4: memref<1x96xf32, #tpu.memory_space<vmem>>, %arg5: memref<1x8x32xf32, #tpu.memory_space<vmem>>, %arg6: memref<1x8x64xf32, #tpu.memory_space<vmem>>) attributes {dimension_semantics = [#tpu.dimension_semantics<parallel>, #tpu.dimension_semantics<parallel>], iteration_bounds = array<i64: 2, 1>, scalar_prefetch = 0 : i64, scratch_operands = 0 : i64, tpu.core_type = #tpu.core_type<tc>, window_params = [{transform_indices = @transform_0, window_bounds = array<i64: 1, 8, 32>}, {pipeline_mode = #tpu.pipeline_mode<synchronous>, transform_indices = @transform_1, window_bounds = array<i64: 32, 96>}, {pipeline_mode = #tpu.pipeline_mode<synchronous>, transform_indices = @transform_2, window_bounds = array<i64: 1, 96>}, {transform_indices = @transform_3, window_bounds = array<i64: 1, 8, 32>}, {transform_indices = @transform_4, window_bounds = array<i64: 1, 8, 64>}]} {
    %c0 = arith.constant 0 : index
    %c0_0 = arith.constant 0 : index
    %c0_1 = arith.constant 0 : index
    %0 = vector.load %arg2[%c0, %c0_0, %c0_1] : memref<1x8x32xf32, #tpu.memory_space<vmem>>, vector<1x8x32xf32>
    %1 = vector.shape_cast %0 : vector<1x8x32xf32> to vector<8x32xf32>
    %c0_2 = arith.constant 0 : index
    %c0_3 = arith.constant 0 : index
    %2 = vector.load %arg3[%c0_2, %c0_3] : memref<32x96xf32, #tpu.memory_space<vmem>>, vector<32x96xf32>
    %cst = arith.constant dense<0.000000e+00> : vector<8x96xf32>
    %3 = tpu.matmul %1, %2, %cst {dimension_numbers = #tpu.dot_dimension_numbers<[1], [0], [0], [1], [0, 0, 1, 1], [], []>} : vector<8x32xf32>, vector<32x96xf32>, vector<8x96xf32> -> vector<8x96xf32>
    %c0_4 = arith.constant 0 : index
    %c0_5 = arith.constant 0 : index
    %4 = vector.load %arg4[%c0_4, %c0_5] : memref<1x96xf32, #tpu.memory_space<vmem>>, vector<1x96xf32>
    %5 = vector.broadcast %4 : vector<1x96xf32> to vector<8x96xf32>
    %6 = arith.addf %3, %5 : vector<8x96xf32>
    %cst_6 = arith.constant 0.000000e+00 : f32
    %7 = vector.broadcast %cst_6 : f32 to vector<8x96xf32>
    %8 = arith.maximumf %6, %7 : vector<8x96xf32>
    %9 = vector.extract_strided_slice %8 {offsets = [0, 0], sizes = [8, 32], strides = [1, 1]} : vector<8x96xf32> to vector<8x32xf32>
    %c0_7 = arith.constant 0 : index
    %c0_8 = arith.constant 0 : index
    %c0_9 = arith.constant 0 : index
    %10 = vector.load %arg5[%c0_7, %c0_8, %c0_9] : memref<1x8x32xf32, #tpu.memory_space<vmem>>, vector<1x8x32xf32>
    %11 = vector.shape_cast %10 : vector<1x8x32xf32> to vector<8x32xf32>
    %12 = vector.shape_cast %9 : vector<8x32xf32> to vector<1x8x32xf32>
    tpu.vector_store %arg5[%c0_7, %c0_8, %c0_9], %12 {strides = array<i32>} : memref<1x8x32xf32, #tpu.memory_space<vmem>>, vector<1x8x32xf32>,
    %13 = vector.extract_strided_slice %8 {offsets = [0, 32], sizes = [8, 64], strides = [1, 1]} : vector<8x96xf32> to vector<8x64xf32>
    %c0_10 = arith.constant 0 : index
    %c0_11 = arith.constant 0 : index
    %c0_12 = arith.constant 0 : index
    %14 = vector.load %arg6[%c0_10, %c0_11, %c0_12] : memref<1x8x64xf32, #tpu.memory_space<vmem>>, vector<1x8x64xf32>
    %15 = vector.shape_cast %14 : vector<1x8x64xf32> to vector<8x64xf32>
    %16 = vector.shape_cast %13 : vector<8x64xf32> to vector<1x8x64xf32>
    tpu.vector_store %arg6[%c0_10, %c0_11, %c0_12], %16 {strides = array<i32>} : memref<1x8x64xf32, #tpu.memory_space<vmem>>, vector<1x8x64xf32>,
    return
  }
  func.func @transform_0(%arg0: i32, %arg1: i32) -> (i32, i32, i32) {
    %c0_i32 = arith.constant 0 : i32
    %c0_i32_0 = arith.constant 0 : i32
    return %arg0, %arg1, %c0_i32 : i32, i32, i32
  }
  func.func @transform_1(%arg0: i32, %arg1: i32) -> (i32, i32) {
    %c0_i32 = arith.constant 0 : i32
    %c0_i32_0 = arith.constant 0 : i32
    %c0_i32_1 = arith.constant 0 : i32
    return %c0_i32, %c0_i32_0 : i32, i32
  }
  func.func @transform_2(%arg0: i32, %arg1: i32) -> (i32, i32) {
    %c0_i32 = arith.constant 0 : i32
    %c0_i32_0 = arith.constant 0 : i32
    %c0_i32_1 = arith.constant 0 : i32
    return %c0_i32, %c0_i32_0 : i32, i32
  }
  func.func @transform_3(%arg0: i32, %arg1: i32) -> (i32, i32, i32) {
    %c0_i32 = arith.constant 0 : i32
    %c0_i32_0 = arith.constant 0 : i32
    return %arg0, %arg1, %c0_i32 : i32, i32, i32
  }
  func.func @transform_4(%arg0: i32, %arg1: i32) -> (i32, i32, i32) {
    %c0_i32 = arith.constant 0 : i32
    %c0_i32_0 = arith.constant 0 : i32
    return %arg0, %arg1, %c0_i32 : i32, i32, i32
  }
}

</mosaic_0001>

<llo_original>
// kernel: tpu_custom_call.1
$region0: #{tpu_custom_call.1}
  #allocation0 [shape = 'u32[]', space=smem, size = 0x4, offset = 0x4, fixed_abs, tag = 'smem constant byte address 0x4 - core index']
  #allocation1 [shape = 'u32[144,128]{1,0:T(1,128)}', space=vmem, size = 0x12000, scoped, tag = 'internal scratch']
  %s0 = inlined_call_operand.hbm [shape: f32[2,8,32], index: 0, kind: input, shape index: {}]
  %s1 = inlined_call_operand.hbm [shape: f32[32,96], index: 1, kind: input, shape index: {}]
  %s2 = inlined_call_operand.vmem [shape: f32[1,96], index: 2, kind: input, shape index: {}]
  %s3 = inlined_call_operand.hbm [shape: f32[2,8,32], index: 3, kind: output, shape index: {0}]
  %s4 = inlined_call_operand.hbm [shape: f32[2,8,64], index: 4, kind: output, shape index: {1}]
  %5 = xla_tuple %s3, %s4
  %s6 = sld [smem:[#allocation0]]
  $region61: #{tpu_custom_call.1} parent=0
    _
  %s8 = ssub.s32 1, %s6
  %s9 = scalar_select 0, %s8, %s6
  $region1: #{tpu_custom_call.1} parent=0
    #allocation2 [shape = 'u8[8192]{0}', space=vmem, size = 0x2000, scoped, tag = 'input window, operand 0']
    #allocation3 [shape = 's32[2]{0}', space=sflag, size = 0x8, scoped, tag = 'scoped memory for tpu_custom_call.1']
    #allocation4 [shape = 's32[2]{0}', space=sflag, size = 0x8, scoped, tag = 'scoped memory for tpu_custom_call.1']
    #allocation5 [shape = 'u8[16384]{0}', space=vmem, size = 0x4000, scoped, tag = 'input window, operand 1, single buffered']
    #allocation6 [shape = 's32[1]{0}', space=sflag, size = 0x4, scoped, tag = 'scoped memory for tpu_custom_call.1']
    #allocation7 [shape = 'u8[8192]{0}', space=vmem, size = 0x2000, scoped, tag = 'output window, operand 0']
    #allocation8 [shape = 'u8[8192]{0}', space=vmem, size = 0x2000, scoped, tag = 'output window, operand 1']
    #allocation9 [shape = 's32[2]{0}', space=sflag, size = 0x8, scoped, tag = 'scoped memory for tpu_custom_call.1']
    %10 = vsyncpa [#allocation3], 0
    %s11 = scalar_lea.sflag [#allocation3], 1
    %12 = vsyncpa %s11, 0
    %13 = vsyncpa [#allocation6], 0
    %14 = vsyncpa [#allocation4], 0
    %s15 = scalar_lea.sflag [#allocation4], 1
    %16 = vsyncpa %s15, 0
    %17 = vsyncpa [#allocation9], 0
    %s18 = scalar_lea.sflag [#allocation9], 1
    %19 = vsyncpa %s18, 0
    loop: start=0, step=1, limit=4
    $region2: #{tpu_custom_call.1} parent=1 // loop_pre_header
      _
    $region3: #{tpu_custom_call.1} parent=1 // loop_header
      %s21 = sphi 0, %s25
      %p22 = scmp.ge.s32.totalorder %s21, 4
      %s28 = sphi 0, %s40
      %s29 = sphi 0, %s36
      %s30 = sphi 0, %s28
      %s31 = sphi 0, %s29
      %s32 = sphi 0, %s30
      %s33 = sphi 0, %s31
      %s45 = sphi 0, %s47
      %s48 = sphi 0, %s45
      %s49 = sphi 0, %s48
      %s65 = sphi 0, %s49
      %s69 = sphi 0, %s69
      %s71 = sphi 0, %s69
      %s72 = sphi 0, %s71
      %s86 = sphi 0, %s72
      %s90 = sphi 0, %s90
      %s92 = sphi 0, %s90
      %s93 = sphi 0, %s92
      %s107 = sphi 0, %s93
      %s115 = sphi 0, %s117
      %s118 = sphi 0, %s115
      %s119 = sphi 0, %s118
      %s135 = sphi 0, %s119
      %s143 = sphi 0, %s145
      %s146 = sphi 0, %s143
      %s147 = sphi 0, %s146
      %s163 = sphi 0, %s147
    $region4: #{tpu_custom_call.1} parent=1 // loop_header_branch
      %24 = sbr.rel (%p22) target = $region8
    $region5: #{tpu_custom_call.1} parent=1 // loop_body
      %s26 = ssub.s32 %s21, 1
      %s27 = ssub.s32 %s21, 2
      %s34 = sadd.s32 1, %s29
      %p35 = scmp.ge.s32.totalorder %s34, 1
      %s36 = scalar_select %p35, 0, %s34
      %s37 = sadd.s32 1, %s28
      %s38 = scalar_select %p35, %s37, %s28
      %p39 = scmp.ge.s32.totalorder %s38, 2
      %s40 = scalar_select %p39, 0, %s38
      %s41 = ssub.s32 %s28, %s40
      %s42 = ssub.s32 %s29, %s36
      %s43 = sor.u32 %s41, %s42
      %p44 = scmp.eq.s32.totalorder %s43, 0
      %s46 = sadd.s32 %s45, 1
      %s47 = scalar_select %p44, %s45, %s46
      %p50 = pneg %p44
      %p51 = scmp.eq.s32.totalorder %s21, 1
      %p52 = por %p50, %p51
      %p53 = scmp.ne.s32.totalorder %s45, %s48
      %p54 = scmp.eq.s32.totalorder %s21, 0
      %p55 = por %p53, %p54
      %p56 = scmp.ne.s32.totalorder %s45, %s48
      %p57 = scmp.eq.s32.totalorder %s26, 1
      %p58 = por %p56, %p57
      %p59 = scmp.ne.s32.totalorder %s48, %s49
      %p60 = scmp.eq.s32.totalorder %s26, 0
      %p61 = por %p59, %p60
      %p62 = scmp.ne.s32.totalorder %s48, %s49
      %p63 = scmp.eq.s32.totalorder %s27, 1
      %p64 = por %p62, %p63
      %p66 = scmp.ne.s32.totalorder %s49, %s65
      %p67 = scmp.eq.s32.totalorder %s27, 0
      %p68 = por %p66, %p67
      %s70 = sadd.s32 %s69, 1
      %p73 = scmp.eq.s32.totalorder %s21, 1
      %p74 = scmp.ne.s32.totalorder %s69, %s71
      %p75 = scmp.eq.s32.totalorder %s21, 0
      %p76 = por %p74, %p75
      %p77 = scmp.ne.s32.totalorder %s69, %s71
      %p78 = scmp.eq.s32.totalorder %s26, 1
      %p79 = por %p77, %p78
      %p80 = scmp.ne.s32.totalorder %s71, %s72
      %p81 = scmp.eq.s32.totalorder %s26, 0
      %p82 = por %p80, %p81
      %p83 = scmp.ne.s32.totalorder %s71, %s72
      %p84 = scmp.eq.s32.totalorder %s27, 1
      %p85 = por %p83, %p84
      %p87 = scmp.ne.s32.totalorder %s72, %s86
      %p88 = scmp.eq.s32.totalorder %s27, 0
      %p89 = por %p87, %p88
      %s91 = sadd.s32 %s90, 1
      %p94 = scmp.eq.s32.totalorder %s21, 1
      %p95 = scmp.ne.s32.totalorder %s90, %s92
      %p96 = scmp.eq.s32.totalorder %s21, 0
      %p97 = por %p95, %p96
      %p98 = scmp.ne.s32.totalorder %s90, %s92
      %p99 = scmp.eq.s32.totalorder %s26, 1
      %p100 = por %p98, %p99
      %p101 = scmp.ne.s32.totalorder %s92, %s93
      %p102 = scmp.eq.s32.totalorder %s26, 0
      %p103 = por %p101, %p102
      %p104 = scmp.ne.s32.totalorder %s92, %s93
      %p105 = scmp.eq.s32.totalorder %s27, 1
      %p106 = por %p104, %p105
      %p108 = scmp.ne.s32.totalorder %s93, %s107
      %p109 = scmp.eq.s32.totalorder %s27, 0
      %p110 = por %p108, %p109
      %s111 = ssub.s32 %s28, %s40
      %s112 = ssub.s32 %s29, %s36
      %s113 = sor.u32 %s111, %s112
      %p114 = scmp.eq.s32.totalorder %s113, 0
      %s116 = sadd.s32 %s115, 1
      %s117 = scalar_select %p114, %s115, %s116
      %p120 = pneg %p114
      %p121 = scmp.eq.s32.totalorder %s21, 1
      %p122 = por %p120, %p121
      %p123 = scmp.ne.s32.totalorder %s115, %s118
      %p124 = scmp.eq.s32.totalorder %s21, 0
      %p125 = por %p123, %p124
      %p126 = scmp.ne.s32.totalorder %s115, %s118
      %p127 = scmp.eq.s32.totalorder %s26, 1
      %p128 = por %p126, %p127
      %p129 = scmp.ne.s32.totalorder %s118, %s119
      %p130 = scmp.eq.s32.totalorder %s26, 0
      %p131 = por %p129, %p130
      %p132 = scmp.ne.s32.totalorder %s118, %s119
      %p133 = scmp.eq.s32.totalorder %s27, 1
      %p134 = por %p132, %p133
      %p136 = scmp.ne.s32.totalorder %s119, %s135
      %p137 = scmp.eq.s32.totalorder %s27, 0
      %p138 = por %p136, %p137
      %s139 = ssub.s32 %s28, %s40
      %s140 = ssub.s32 %s29, %s36
      %s141 = sor.u32 %s139, %s140
      %p142 = scmp.eq.s32.totalorder %s141, 0
      %s144 = sadd.s32 %s143, 1
      %s145 = scalar_select %p142, %s143, %s144
      %p148 = pneg %p142
      %p149 = scmp.eq.s32.totalorder %s21, 1
      %p150 = por %p148, %p149
      %p151 = scmp.ne.s32.totalorder %s143, %s146
      %p152 = scmp.eq.s32.totalorder %s21, 0
      %p153 = por %p151, %p152
      %p154 = scmp.ne.s32.totalorder %s143, %s146
      %p155 = scmp.eq.s32.totalorder %s26, 1
      %p156 = por %p154, %p155
      %p157 = scmp.ne.s32.totalorder %s146, %s147
      %p158 = scmp.eq.s32.totalorder %s26, 0
      %p159 = por %p157, %p158
      %p160 = scmp.ne.s32.totalorder %s146, %s147
      %p161 = scmp.eq.s32.totalorder %s27, 1
      %p162 = por %p160, %p161
      %p164 = scmp.ne.s32.totalorder %s147, %s163
      %p165 = scmp.eq.s32.totalorder %s27, 0
      %p166 = por %p164, %p165
      %p167 = scmp.le.s32.totalorder 1, %s21
      %p168 = scmp.lt.s32.totalorder %s21, 3
      %p169 = pnand %p167, %p168
      %p170 = pneg %p169
      // Predicated region
      $region9: #{tpu_custom_call.1} parent=5 // pred_check
        _
      $region10: #{tpu_custom_call.1} parent=5 // pred_check_branch
        %172 = sbr.rel (%p169) target = $region12
      $region11: #{tpu_custom_call.1} parent=5 // pred_region
        %s173 = ssub.s32 %s21, 1
        // Predicated region
        $region13: #{tpu_custom_call.1} parent=11 // pred_check
          %p174 = pneg %p82
        $region14: #{tpu_custom_call.1} parent=11 // pred_check_branch
          %176 = sbr.rel (%p174) target = $region16
        $region15: #{tpu_custom_call.1} parent=11 // pred_region
          %s178 = ssub.s32 512, 512
          %179 = vsyncadd [#allocation6], %s178
          %s180 = sshll.u32 [#allocation5], 4
          %s181 = int_to_ptr.vmem [resolvable:$true] %s180
          %186 = dma.hbm_to_vmem [thread:$0]  %s1, 512, %s181, [#allocation6], 128, 128, 8
        $region16: #{tpu_custom_call.1} parent=11 // pred_fallthru
          _
        // Predicated region
        $region17: #{tpu_custom_call.1} parent=11 // pred_check
          %p187 = pneg %p103
        $region18: #{tpu_custom_call.1} parent=11 // pred_check_branch
          %189 = sbr.rel (%p187) target = $region20
        $region19: #{tpu_custom_call.1} parent=11 // pred_region
          _
        $region20: #{tpu_custom_call.1} parent=11 // pred_fallthru
          _
      $region12: #{tpu_custom_call.1} parent=5 // pred_fallthru
        _
      %p190 = scmp.lt.s32.totalorder %s21, 2
      // Predicated region
      $region21: #{tpu_custom_call.1} parent=5 // pred_check
        %p191 = pneg %p190
      $region22: #{tpu_custom_call.1} parent=5 // pred_check_branch
        %193 = sbr.rel (%p191) target = $region24
      $region23: #{tpu_custom_call.1} parent=5 // pred_region
        // Predicated region
        $region25: #{tpu_custom_call.1} parent=23 // pred_check
          %p194 = pneg %p55
        $region26: #{tpu_custom_call.1} parent=23 // pred_check_branch
          %196 = sbr.rel (%p194) target = $region28
        $region27: #{tpu_custom_call.1} parent=23 // pred_region
          %s197 = sand.u32 %s45, 1
          %s198 = scalar_lea.sflag [#allocation3], %s197
          %s199 = sand.u32 %s45, 1
          %s200 = smul.addr %s199, 8
          %s201 = scalar_lea.vmem [#allocation2], %s200
          %s203 = ssub.s32 128, 128
          %204 = vsyncadd %s198, %s203
          %s205 = sadd.s32 %s29, %s28
          %s206 = smul.addr %s205, 128
          %s207 = scalar_lea.hbm %s0, %s206
          %s209 = sshll.u32 %s201, 4
          %s210 = int_to_ptr.vmem [resolvable:$true] %s209
          %212 = dma.hbm_to_vmem [thread:$0]  %s207, 128, %s210, %s198
        $region28: #{tpu_custom_call.1} parent=23 // pred_fallthru
          _
      $region24: #{tpu_custom_call.1} parent=5 // pred_fallthru
        _
      %p213 = scmp.le.s32.totalorder 1, %s21
      %p214 = scmp.lt.s32.totalorder %s21, 3
      %p215 = pnand %p213, %p214
      %p216 = pneg %p215
      // Predicated region
      $region29: #{tpu_custom_call.1} parent=5 // pred_check
        _
      $region30: #{tpu_custom_call.1} parent=5 // pred_check_branch
        %218 = sbr.rel (%p215) target = $region32
      $region31: #{tpu_custom_call.1} parent=5 // pred_region
        %s219 = ssub.s32 %s21, 1
        %s220 = sand.u32 %s48, 1
        %s221 = scalar_lea.sflag [#allocation3], %s220
        %s222 = sand.u32 %s48, 1
        %s223 = smul.addr %s222, 8
        %s224 = scalar_lea.vmem [#allocation2], %s223
        // Predicated region
        $region33: #{tpu_custom_call.1} parent=31 // pred_check
          %p225 = pneg %p61
        $region34: #{tpu_custom_call.1} parent=31 // pred_check_branch
          %227 = sbr.rel (%p225) target = $region36
        $region35: #{tpu_custom_call.1} parent=31 // pred_region
          %228 = dma.done %s221, 128
        $region36: #{tpu_custom_call.1} parent=31 // pred_fallthru
          _
        // Predicated region
        $region37: #{tpu_custom_call.1} parent=31 // pred_check
          %p229 = pneg %p82
        $region38: #{tpu_custom_call.1} parent=31 // pred_check_branch
          %231 = sbr.rel (%p229) target = $region40
        $region39: #{tpu_custom_call.1} parent=31 // pred_region
          %232 = dma.done [#allocation6], 512
        $region40: #{tpu_custom_call.1} parent=31 // pred_fallthru
          _
        %s233 = sand.u32 %s48, 1
        %s234 = scalar_lea.sflag [#allocation3], %s233
        %s235 = sand.u32 %s48, 1
        %s236 = smul.addr %s235, 8
        %s237 = scalar_lea.vmem [#allocation2], %s236
        %p238 = pneg %p61
        %p239 = pneg %p58
        %p240 = pneg %p82
        %p241 = pneg %p79
        %p242 = pneg %p103
        %p243 = pneg %p100
        %p244 = pneg %p131
        %p245 = pneg %p128
        %s246 = sand.u32 %s118, 1
        %s247 = scalar_lea.sflag [#allocation4], %s246
        %s248 = sand.u32 %s118, 1
        %s249 = smul.addr %s248, 8
        %s250 = scalar_lea.vmem [#allocation7], %s249
        %p251 = pneg %p159
        %p252 = pneg %p156
        %s253 = sand.u32 %s146, 1
        %s254 = scalar_lea.sflag [#allocation9], %s253
        %s255 = sand.u32 %s146, 1
        %s256 = smul.addr %s255, 8
        %s257 = scalar_lea.vmem [#allocation8], %s256
        %v258 = vld [vmem:[%s224] sm:$0xff]
        %v259 = vld [vmem:[#allocation5] sm:$0xff]
        %v260 = vld [vmem:[#allocation5 + $0x8] sm:$0xff]
        %v261 = vld [vmem:[#allocation5 + $0x10] sm:$0xff]
        %v262 = vld [vmem:[#allocation5 + $0x18] sm:$0xff]
        %v263 = vld [vmem:[%s2] sm:$0x1]
        %v265 = vlaneseq
        %v266 = vshrl.u32 %v265, 7
        %v267 = vsub.s32 0, %v266
        %v268 = vrot.slane %v263, %v267
        %vm270 = vcmask 261120
        %v272 = vsel %vm270, %v258, 0
        %274 = vmatprep.subr.mxu0 0.0
        %275 = vmatpush1.msra.mxu0 %v259
        %276 = vmatprep.subr.mxu0 0.0
        %277 = vmatpush1.msra.mxu0 %v260
        %278 = vmatprep.subr.mxu0 0.0
        %279 = vmatpush1.msra.mxu0 %v261
        %280 = vmatprep.subr.mxu0 0.0
        %281 = vmatpush1.msra.mxu0 %v262
        %282 = vmatprep.subr.mxu0 0.0
        %283 = vmatpush1.msra.mxu0 0.0
        %284 = vmatprep.subr.mxu0 0.0
        %285 = vmatpush1.msra.mxu0 0.0
        %286 = vmatprep.subr.mxu0 0.0
        %287 = vmatpush1.msra.mxu0 0.0
        %288 = vmatprep.subr.mxu0 0.0
        %289 = vmatpush1.msra.mxu0 0.0
        %290 = vmatprep.subr.mxu0 0.0
        %291 = vmatpush1.msra.mxu0 0.0
        %292 = vmatprep.subr.mxu0 0.0
        %293 = vmatpush1.msra.mxu0 0.0
        %294 = vmatprep.subr.mxu0 0.0
        %295 = vmatpush1.msra.mxu0 0.0
        %296 = vmatprep.subr.mxu0 0.0
        %297 = vmatpush1.msra.mxu0 0.0
        %298 = vmatprep.subr.mxu0 0.0
        %299 = vmatpush1.msra.mxu0 0.0
        %300 = vmatprep.subr.mxu0 0.0
        %301 = vmatpush1.msra.mxu0 0.0
        %302 = vmatprep.subr.mxu0 0.0
        %303 = vmatpush1.msra.mxu0 0.0
        %304 = vmatprep.subr.mxu0 0.0
        %305 = vmatpush1.msra.mxu0 0.0
        %306 = vmatprep.subr.mxu0 0.0
        %307 = vmatpush1.msra.mxu0 0.0
        %308 = vmatprep.subr.mxu0 0.0
        %309 = vmatpush1.msra.mxu0 0.0
        %310 = vmatprep.subr.mxu0 0.0
        %311 = vmatpush1.msra.mxu0 0.0
        %312 = vmatprep.subr.mxu0 0.0
        %313 = vmatpush1.msra.mxu0 0.0
        %314 = vmatprep.subr.mxu0 0.0
        %315 = vmatpush1.msra.mxu0 0.0
        %316 = vmatprep.subr.mxu0 0.0
        %317 = vmatpush1.msra.mxu0 0.0
        %318 = vmatprep.subr.mxu0 0.0
        %319 = vmatpush1.msra.mxu0 0.0
        %320 = vmatprep.subr.mxu0 0.0
        %321 = vmatpush1.msra.mxu0 0.0
        %322 = vmatprep.subr.mxu0 0.0
        %323 = vmatpush1.msra.mxu0 0.0
        %324 = vmatprep.subr.mxu0 0.0
        %325 = vmatpush1.msra.mxu0 0.0
        %326 = vmatprep.subr.mxu0 0.0
        %327 = vmatpush1.msra.mxu0 0.0
        %328 = vmatprep.subr.mxu0 0.0
        %329 = vmatpush1.msra.mxu0 0.0
        %330 = vmatprep.subr.mxu0 0.0
        %331 = vmatpush1.msra.mxu0 0.0
        %332 = vmatprep.subr.mxu0 0.0
        %333 = vmatpush1.msra.mxu0 0.0
        %334 = vmatprep.subr.mxu0 0.0
        %335 = vmatpush1.msra.mxu0 0.0
        %336 = vmatprep.subr.mxu0 0.0
        %337 = vmatpush1.msra.mxu0 0.0
        %338 = vmatprep.mubr.f32.mxu0 0.0
        %339 = vmatmul.mubr.f32.gmra.mrb[0].mxu0 %v272
        %v340 = vpop.f32.mrb[0].mxu0
        %v341 = vadd.f32 %v268, %v340
        %v342 = vpop.f32.mrb[0].mxu0
        %343 = vdwg.mxu0
        %v344 = vmax.f32 %v341, 0.0
        %345 = vst.msk [vmem:[%s250] sm:$0xff] %vm270, %v344
        %347 = vrot.lane.b32.xlu0 %v344, 96
        %v348 = vpop.permute.xlu0 %347
        %vm350 = vcmask 523264
        %351 = vst.msk [vmem:[%s257] sm:$0xff] %vm350, %v348
        %s352 = sand.u32 %s118, 1
        %s353 = scalar_lea.sflag [#allocation4], %s352
        %s354 = sand.u32 %s118, 1
        %s355 = smul.addr %s354, 8
        %s356 = scalar_lea.vmem [#allocation7], %s355
        %s357 = sand.u32 %s146, 1
        %s358 = scalar_lea.sflag [#allocation9], %s357
        %s359 = sand.u32 %s146, 1
        %s360 = smul.addr %s359, 8
        %s361 = scalar_lea.vmem [#allocation8], %s360
        // Predicated region
        $region41: #{tpu_custom_call.1} parent=31 // pred_check
          %p362 = pneg %p128
        $region42: #{tpu_custom_call.1} parent=31 // pred_check_branch
          %364 = sbr.rel (%p362) target = $region44
        $region43: #{tpu_custom_call.1} parent=31 // pred_region
          %s366 = ssub.s32 128, 128
          %367 = vsyncadd %s353, %s366
          %s368 = sadd.s32 %s31, %s30
          %s369 = smul.addr %s368, 128
          %s370 = scalar_lea.hbm %s3, %s369
          %s372 = sshll.u32 %s356, 4
          %s373 = int_to_ptr.vmem [resolvable:$true] %s372
          %375 = dma.vmem_to_hbm [thread:$0]  %s373, 128, %s370, %s353
        $region44: #{tpu_custom_call.1} parent=31 // pred_fallthru
          _
        // Predicated region
        $region45: #{tpu_custom_call.1} parent=31 // pred_check
          %p376 = pneg %p156
        $region46: #{tpu_custom_call.1} parent=31 // pred_check_branch
          %378 = sbr.rel (%p376) target = $region48
        $region47: #{tpu_custom_call.1} parent=31 // pred_region
          %s380 = ssub.s32 128, 128
          %381 = vsyncadd %s358, %s380
          %s382 = sadd.s32 %s31, %s30
          %s383 = smul.addr %s382, 128
          %s384 = scalar_lea.hbm %s4, %s383
          %s386 = sshll.u32 %s361, 4
          %s387 = int_to_ptr.vmem [resolvable:$true] %s386
          %389 = dma.vmem_to_hbm [thread:$0]  %s387, 128, %s384, %s358
        $region48: #{tpu_custom_call.1} parent=31 // pred_fallthru
          _
      $region32: #{tpu_custom_call.1} parent=5 // pred_fallthru
        _
      %p390 = scmp.le.s32.totalorder 2, %s21
      // Predicated region
      $region49: #{tpu_custom_call.1} parent=5 // pred_check
        %p391 = pneg %p390
      $region50: #{tpu_custom_call.1} parent=5 // pred_check_branch
        %393 = sbr.rel (%p391) target = $region52
      $region51: #{tpu_custom_call.1} parent=5 // pred_region
        %s394 = ssub.s32 %s21, 2
        // Predicated region
        $region53: #{tpu_custom_call.1} parent=51 // pred_check
          %p395 = pneg %p134
        $region54: #{tpu_custom_call.1} parent=51 // pred_check_branch
          %397 = sbr.rel (%p395) target = $region56
        $region55: #{tpu_custom_call.1} parent=51 // pred_region
          %s398 = sand.u32 %s119, 1
          %s399 = scalar_lea.sflag [#allocation4], %s398
          %s400 = sand.u32 %s119, 1
          %s401 = smul.addr %s400, 8
          %s402 = scalar_lea.vmem [#allocation7], %s401
          %403 = dma.done %s399, 128
        $region56: #{tpu_custom_call.1} parent=51 // pred_fallthru
          _
        // Predicated region
        $region57: #{tpu_custom_call.1} parent=51 // pred_check
          %p404 = pneg %p162
        $region58: #{tpu_custom_call.1} parent=51 // pred_check_branch
          %406 = sbr.rel (%p404) target = $region60
        $region59: #{tpu_custom_call.1} parent=51 // pred_region
          %s407 = sand.u32 %s147, 1
          %s408 = scalar_lea.sflag [#allocation9], %s407
          %s409 = sand.u32 %s147, 1
          %s410 = smul.addr %s409, 8
          %s411 = scalar_lea.vmem [#allocation8], %s410
          %412 = dma.done %s408, 128
        $region60: #{tpu_custom_call.1} parent=51 // pred_fallthru
          _
      $region52: #{tpu_custom_call.1} parent=5 // pred_fallthru
        _
    $region6: #{tpu_custom_call.1} parent=1 // loop_footer
      %s25 = sadd.s32 1, %s21
    $region7: #{tpu_custom_call.1} parent=1 // loop_footer_branch
      %20 = sbr.rel target = $region3
    $region8: #{tpu_custom_call.1} parent=1 // loop_exit
      _
    %413 = vsyncpa [#allocation3], 1
    %s414 = scalar_lea.sflag [#allocation3], 1
    %415 = vsyncpa %s414, 1
    %416 = vsyncpa [#allocation6], 1
    %417 = vsyncpa [#allocation4], 1
    %s418 = scalar_lea.sflag [#allocation4], 1
    %419 = vsyncpa %s418, 1
    %420 = vsyncpa [#allocation9], 1
    %s421 = scalar_lea.sflag [#allocation9], 1
    %422 = vsyncpa %s421, 1

</llo_original>
